<compile_context>
chip_gen: v5e
topology: v5e:2x2
jax: 0.10.0
libtpu: 0.0.40
codegen_flags: <defaults>
</compile_context>

<pallas_src>
import functools

import jax
import jax.numpy as jnp
from jax.experimental import pallas as pl
from jax.experimental.pallas import tpu as pltpu


def decoder_kernel(x_ref, w1_ref, b1_ref, w2_ref, b2_ref, w3_ref, b3_ref,
                   o_ref, *, mxu_dtype):
    """Three MXU matmuls + VPU bias-add/ReLU on VMEM tiles."""

    def mm(a, w_ref):
        w = w_ref[...]
        if mxu_dtype is not None:
            a = a.astype(mxu_dtype)
            w = w.astype(mxu_dtype)
        return jnp.dot(a, w, preferred_element_type=jnp.float32)

    x = x_ref[...]
    h1 = jnp.maximum(mm(x, w1_ref) + b1_ref[...], 0.0)
    h2 = jnp.maximum(mm(h1, w2_ref) + b2_ref[...], 0.0)
    out = mm(h2, w3_ref) + b3_ref[...]
    o_ref[...] = out.astype(o_ref.dtype)


def pack_decoder_params(params, *, pack=4):
    """One-time prep: block-diagonal weights / tiled biases for row packing.

    Hoisted out of the forward path so serving loops pay this cost once.
    """

    def blockdiag(w):
        # blockdiag(w, ..., w) with `pack` copies: (fi, fo) -> (pack*fi, pack*fo)
        return jnp.kron(jnp.eye(pack, dtype=w.dtype), w)

    packed = {}
    for i in (1, 2, 3):
        packed[f"w{i}"] = blockdiag(params[f"w{i}"])
        packed[f"b{i}"] = jnp.tile(params[f"b{i}"], (1, pack))
    return packed


def decoder_forward(x, packed_params, *, pack=4, tile_rows=2048,
                    mxu_dtype=None):
    """x: (B, latent). packed_params: output of pack_decoder_params.

    tile_rows = packed-row tile (each packed row carries `pack` batch rows).
    Default 2048 amortizes per-step overhead on all chips; sweep higher
    (e.g. 4096) on v7x, keep <=~4096 on v5e unless vmem_limit_bytes is raised.
    """
    w1p, b1p = packed_params["w1"], packed_params["b1"]
    w2p, b2p = packed_params["w2"], packed_params["b2"]
    w3p, b3p = packed_params["w3"], packed_params["b3"]

    B, latent = x.shape
    assert w1p.shape[0] == pack * latent, "packed params don't match pack/latent"
    h1 = w1p.shape[1] // pack
    h2d = w2p.shape[1] // pack
    out_dim = w3p.shape[1] // pack

    # --- padding-aware tile selection (bounds last-tile waste to <8 rows) ---
    packed_rows = -(-B // pack)
    max_tile = max(8, (tile_rows // 8) * 8)
    num_tiles = -(-packed_rows // max_tile)
    tbp = -(-packed_rows // num_tiles)
    tbp = ((tbp + 7) // 8) * 8
    bp_packed = num_tiles * tbp
    b_pad = pack * bp_packed

    if b_pad != B:
        x = jnp.pad(x, ((0, b_pad - B), (0, 0)))
    # Free row-major view: row k of x_p = [x[pack*k] | ... | x[pack*k+pack-1]].
    x_p = x.reshape(bp_packed, pack * latent)

    # Advisory cost estimate (logical, unpadded work).
    flops = 2 * B * (latent * h1 + h1 * h2d + h2d * out_dim)
    bytes_accessed = 4 * (
        x_p.size + bp_packed * pack * out_dim
        + w1p.size + w2p.size + w3p.size + b1p.size + b2p.size + b3p.size
    )

    def resident(arr):
        # Full-extent block, constant block index -> stays in VMEM, no re-DMA.
        # (Optionally pipeline_mode=pl.Buffered(1) to drop the second buffer;
        #  footprint is tiny so we keep the default.)
        return pl.BlockSpec(arr.shape, lambda i: (0, 0))

    kernel = functools.partial(decoder_kernel, mxu_dtype=mxu_dtype)

    out_p = pl.pallas_call(
        kernel,
        out_shape=jax.ShapeDtypeStruct((bp_packed, pack * out_dim), x.dtype),
        grid=(num_tiles,),
        in_specs=[
            pl.BlockSpec((tbp, pack * latent), lambda i: (i, 0)),   # x tile
            resident(w1p), resident(b1p),
            resident(w2p), resident(b2p),
            resident(w3p), resident(b3p),
        ],
        out_specs=pl.BlockSpec((tbp, pack * out_dim), lambda i: (i, 0)),
        compiler_params=pltpu.CompilerParams(
            dimension_semantics=("parallel",),
        ),
        cost_estimate=pl.CostEstimate(
            flops=flops, transcendentals=0, bytes_accessed=bytes_accessed
        ),
    )(x_p, w1p, b1p, w2p, b2p, w3p, b3p)

    # Free row-major view back to (B_pad, out_dim), then drop padded rows.
    return out_p.reshape(b_pad, out_dim)[:B]


def init_decoder_params(key, input_size, latent_space_size, dtype=jnp.float32):
    """Deterministic synthetic init (uniform, like PyTorch's default scale)."""
    dims = [
        (latent_space_size, input_size // 4),
        (input_size // 4, input_size // 2),
        (input_size // 2, input_size),
    ]
    params = {}
    for i, (fan_in, fan_out) in enumerate(dims, start=1):
        key, kw, kb = jax.random.split(key, 3)
        bound = 1.0 / jnp.sqrt(float(fan_in))
        params[f"w{i}"] = jax.random.uniform(
            kw, (fan_in, fan_out), dtype=dtype, minval=-bound, maxval=bound
        )
        # bias as (1, fan_out) so it stays 2D inside the kernel and broadcasts
        params[f"b{i}"] = jax.random.uniform(
            kb, (1, fan_out), dtype=dtype, minval=-bound, maxval=bound
        )
    return params


def decoder_reference(x, params):
    """Pure-JAX reference for correctness checking."""
    h = jnp.maximum(x @ params["w1"] + params["b1"], 0.0)
    h = jnp.maximum(h @ params["w2"] + params["b2"], 0.0)
    return h @ params["w3"] + params["b3"]


if __name__ == "__main__":
    input_size = 64          # -> hidden dims 16, 32
    latent_space_size = 16
    batch = 8
    pack = 4                 # 256-lane output / full MXU N on v6e/v7x

    key = jax.random.PRNGKey(0)
    key, kx = jax.random.split(key)
    x = jax.random.normal(kx, (batch, latent_space_size), dtype=jnp.float32)

    params = init_decoder_params(key, input_size, latent_space_size)
    packed_params = pack_decoder_params(params, pack=pack)   # one-time prep

    out = decoder_forward(x, packed_params, pack=pack)       # f32 parity path
    out = jax.block_until_ready(out)

    ref = decoder_reference(x, params)
    assert out.shape == (batch, input_size), out.shape
    assert jnp.allclose(out, ref, atol=1e-5, rtol=1e-5), "mismatch vs reference"

    print("KERNEL_OK")
</pallas_src>

<mosaic_0001>
module attributes {stable_mosaic.version = 11 : i64} {
  func.func @decoder_kernel(%arg0: i32, %arg1: memref<8x64xf32, #tpu.memory_space<vmem>>, %arg2: memref<64x64xf32, #tpu.memory_space<vmem>>, %arg3: memref<1x64xf32, #tpu.memory_space<vmem>>, %arg4: memref<64x128xf32, #tpu.memory_space<vmem>>, %arg5: memref<1x128xf32, #tpu.memory_space<vmem>>, %arg6: memref<128x256xf32, #tpu.memory_space<vmem>>, %arg7: memref<1x256xf32, #tpu.memory_space<vmem>>, %arg8: memref<8x256xf32, #tpu.memory_space<vmem>>) attributes {dimension_semantics = [#tpu.dimension_semantics<parallel>], iteration_bounds = array<i64: 1>, scalar_prefetch = 0 : i64, scratch_operands = 0 : i64, tpu.core_type = #tpu.core_type<tc>, window_params = [{transform_indices = @transform_0, window_bounds = array<i64: 8, 64>}, {pipeline_mode = #tpu.pipeline_mode<synchronous>, transform_indices = @transform_1, window_bounds = array<i64: 64, 64>}, {pipeline_mode = #tpu.pipeline_mode<synchronous>, transform_indices = @transform_2, window_bounds = array<i64: 1, 64>}, {pipeline_mode = #tpu.pipeline_mode<synchronous>, transform_indices = @transform_3, window_bounds = array<i64: 64, 128>}, {pipeline_mode = #tpu.pipeline_mode<synchronous>, transform_indices = @transform_4, window_bounds = array<i64: 1, 128>}, {pipeline_mode = #tpu.pipeline_mode<synchronous>, transform_indices = @transform_5, window_bounds = array<i64: 128, 256>}, {pipeline_mode = #tpu.pipeline_mode<synchronous>, transform_indices = @transform_6, window_bounds = array<i64: 1, 256>}, {transform_indices = @transform_7, window_bounds = array<i64: 8, 256>}]} {
    %c0 = arith.constant 0 : index
    %c0_0 = arith.constant 0 : index
    %0 = vector.load %arg1[%c0, %c0_0] : memref<8x64xf32, #tpu.memory_space<vmem>>, vector<8x64xf32>
    %c0_1 = arith.constant 0 : index
    %c0_2 = arith.constant 0 : index
    %1 = vector.load %arg2[%c0_1, %c0_2] : memref<64x64xf32, #tpu.memory_space<vmem>>, vector<64x64xf32>
    %cst = arith.constant dense<0.000000e+00> : vector<8x64xf32>
    %2 = tpu.matmul %0, %1, %cst {dimension_numbers = #tpu.dot_dimension_numbers<[1], [0], [0], [1], [0, 0, 1, 1], [], []>} : vector<8x64xf32>, vector<64x64xf32>, vector<8x64xf32> -> vector<8x64xf32>
    %c0_3 = arith.constant 0 : index
    %c0_4 = arith.constant 0 : index
    %3 = vector.load %arg3[%c0_3, %c0_4] : memref<1x64xf32, #tpu.memory_space<vmem>>, vector<1x64xf32>
    %4 = vector.broadcast %3 : vector<1x64xf32> to vector<8x64xf32>
    %5 = arith.addf %2, %4 : vector<8x64xf32>
    %cst_5 = arith.constant 0.000000e+00 : f32
    %6 = vector.broadcast %cst_5 : f32 to vector<8x64xf32>
    %7 = arith.maximumf %5, %6 : vector<8x64xf32>
    %c0_6 = arith.constant 0 : index
    %c0_7 = arith.constant 0 : index
    %8 = vector.load %arg4[%c0_6, %c0_7] : memref<64x128xf32, #tpu.memory_space<vmem>>, vector<64x128xf32>
    %cst_8 = arith.constant dense<0.000000e+00> : vector<8x128xf32>
    %9 = tpu.matmul %7, %8, %cst_8 {dimension_numbers = #tpu.dot_dimension_numbers<[1], [0], [0], [1], [0, 0, 1, 1], [], []>} : vector<8x64xf32>, vector<64x128xf32>, vector<8x128xf32> -> vector<8x128xf32>
    %c0_9 = arith.constant 0 : index
    %c0_10 = arith.constant 0 : index
    %10 = vector.load %arg5[%c0_9, %c0_10] : memref<1x128xf32, #tpu.memory_space<vmem>>, vector<1x128xf32>
    %11 = vector.broadcast %10 : vector<1x128xf32> to vector<8x128xf32>
    %12 = arith.addf %9, %11 : vector<8x128xf32>
    %cst_11 = arith.constant 0.000000e+00 : f32
    %13 = vector.broadcast %cst_11 : f32 to vector<8x128xf32>
    %14 = arith.maximumf %12, %13 : vector<8x128xf32>
    %c0_12 = arith.constant 0 : index
    %c0_13 = arith.constant 0 : index
    %15 = vector.load %arg6[%c0_12, %c0_13] : memref<128x256xf32, #tpu.memory_space<vmem>>, vector<128x256xf32>
    %cst_14 = arith.constant dense<0.000000e+00> : vector<8x256xf32>
    %16 = tpu.matmul %14, %15, %cst_14 {dimension_numbers = #tpu.dot_dimension_numbers<[1], [0], [0], [1], [0, 0, 1, 1], [], []>} : vector<8x128xf32>, vector<128x256xf32>, vector<8x256xf32> -> vector<8x256xf32>
    %c0_15 = arith.constant 0 : index
    %c0_16 = arith.constant 0 : index
    %17 = vector.load %arg7[%c0_15, %c0_16] : memref<1x256xf32, #tpu.memory_space<vmem>>, vector<1x256xf32>
    %18 = vector.broadcast %17 : vector<1x256xf32> to vector<8x256xf32>
    %19 = arith.addf %16, %18 : vector<8x256xf32>
    %c0_17 = arith.constant 0 : index
    %c0_18 = arith.constant 0 : index
    %20 = vector.load %arg8[%c0_17, %c0_18] : memref<8x256xf32, #tpu.memory_space<vmem>>, vector<8x256xf32>
    tpu.vector_store %arg8[%c0_17, %c0_18], %19 {strides = array<i32>} : memref<8x256xf32, #tpu.memory_space<vmem>>, vector<8x256xf32>,
    return
  }
  func.func @transform_0(%arg0: i32) -> (i32, i32) {
    %c0_i32 = arith.constant 0 : i32
    %c0_i32_0 = arith.constant 0 : i32
    return %arg0, %c0_i32 : i32, i32
  }
  func.func @transform_1(%arg0: i32) -> (i32, i32) {
    %c0_i32 = arith.constant 0 : i32
    %c0_i32_0 = arith.constant 0 : i32
    %c0_i32_1 = arith.constant 0 : i32
    return %c0_i32, %c0_i32_0 : i32, i32
  }
  func.func @transform_2(%arg0: i32) -> (i32, i32) {
    %c0_i32 = arith.constant 0 : i32
    %c0_i32_0 = arith.constant 0 : i32
    %c0_i32_1 = arith.constant 0 : i32
    return %c0_i32, %c0_i32_0 : i32, i32
  }
  func.func @transform_3(%arg0: i32) -> (i32, i32) {
    %c0_i32 = arith.constant 0 : i32
    %c0_i32_0 = arith.constant 0 : i32
    %c0_i32_1 = arith.constant 0 : i32
    return %c0_i32, %c0_i32_0 : i32, i32
  }
  func.func @transform_4(%arg0: i32) -> (i32, i32) {
    %c0_i32 = arith.constant 0 : i32
    %c0_i32_0 = arith.constant 0 : i32
    %c0_i32_1 = arith.constant 0 : i32
    return %c0_i32, %c0_i32_0 : i32, i32
  }
  func.func @transform_5(%arg0: i32) -> (i32, i32) {
    %c0_i32 = arith.constant 0 : i32
    %c0_i32_0 = arith.constant 0 : i32
    %c0_i32_1 = arith.constant 0 : i32
    return %c0_i32, %c0_i32_0 : i32, i32
  }
  func.func @transform_6(%arg0: i32) -> (i32, i32) {
    %c0_i32 = arith.constant 0 : i32
    %c0_i32_0 = arith.constant 0 : i32
    %c0_i32_1 = arith.constant 0 : i32
    return %c0_i32, %c0_i32_0 : i32, i32
  }
  func.func @transform_7(%arg0: i32) -> (i32, i32) {
    %c0_i32 = arith.constant 0 : i32
    %c0_i32_0 = arith.constant 0 : i32
    return %arg0, %c0_i32 : i32, i32
  }
}

</mosaic_0001>

<llo_original>
// kernel: tpu_custom_call.1
$region0: #{tpu_custom_call.1}
  #allocation0 [shape = 'u32[]', space=smem, size = 0x4, offset = 0x4, fixed_abs, tag = 'smem constant byte address 0x4 - core index']
  #allocation1 [shape = 'u32[72,128]{1,0:T(1,128)}', space=vmem, size = 0x9000, scoped, tag = 'internal scratch']
  %s0 = inlined_call_operand.hbm [shape: f32[8,64], index: 0, kind: input, shape index: {}]
  %s1 = inlined_call_operand.hbm [shape: f32[64,64], index: 1, kind: input, shape index: {}]
  %s2 = inlined_call_operand.vmem [shape: f32[1,64], index: 2, kind: input, shape index: {}]
  %s3 = inlined_call_operand.hbm [shape: f32[64,128], index: 3, kind: input, shape index: {}]
  %s4 = inlined_call_operand.hbm [shape: f32[1,128], index: 4, kind: input, shape index: {}]
  %s5 = inlined_call_operand.hbm [shape: f32[128,256], index: 5, kind: input, shape index: {}]
  %s6 = inlined_call_operand.vmem [shape: f32[1,256], index: 6, kind: input, shape index: {}]
  %s7 = inlined_call_operand.hbm [shape: f32[8,256], index: 7, kind: output, shape index: {}]
  %s8 = sld [smem:[#allocation0]]
  $region58: #{tpu_custom_call.1} parent=0
    _
  %s10 = ssub.s32 1, %s8
  %s11 = scalar_select 0, %s10, %s8
  $region1: #{tpu_custom_call.1} parent=0
    #allocation2 [shape = 'u8[4096]{0}', space=vmem, size = 0x1000, scoped, tag = 'input window, operand 0, single buffered']
    #allocation3 [shape = 's32[1]{0}', space=sflag, size = 0x4, scoped, tag = 'scoped memory for tpu_custom_call.1']
    #allocation4 [shape = 's32[1]{0}', space=sflag, size = 0x4, scoped, tag = 'scoped memory for tpu_custom_call.1']
    #allocation5 [shape = 'u8[32768]{0}', space=vmem, size = 0x8000, scoped, tag = 'input window, operand 1, single buffered']
    #allocation6 [shape = 's32[1]{0}', space=sflag, size = 0x4, scoped, tag = 'scoped memory for tpu_custom_call.1']
    #allocation7 [shape = 'u8[32768]{0}', space=vmem, size = 0x8000, scoped, tag = 'input window, operand 3, single buffered']
    #allocation8 [shape = 'u8[512]{0}', space=vmem, size = 0x400, scoped, tag = 'input window, operand 4, single buffered']
    #allocation9 [shape = 's32[1]{0}', space=sflag, size = 0x4, scoped, tag = 'scoped memory for tpu_custom_call.1']
    #allocation10 [shape = 'u8[131072]{0}', space=vmem, size = 0x20000, scoped, tag = 'input window, operand 5, single buffered']
    #allocation11 [shape = 'u8[8192]{0}', space=vmem, size = 0x2000, scoped, tag = 'output window, operand 0, single buffered']
    %12 = vsyncpa [#allocation3], 0
    %13 = vsyncpa [#allocation6], 0
    %14 = vsyncpa [#allocation9], 0
    %15 = vsyncpa [#allocation4], 0
    // Predicated region
    $region2: #{tpu_custom_call.1} parent=1 // pred_check
      _
    $region3: #{tpu_custom_call.1} parent=1 // pred_check_branch
      %17 = sbr.rel (0) target = $region5
    $region4: #{tpu_custom_call.1} parent=1 // pred_region
      %19 = vsyncadd [#allocation3], 0
      %s21 = sshll.u32 %s0, 4
      %s22 = int_to_ptr.hbm [resolvable:$true] %s21
      %s23 = sshll.u32 [#allocation2], 4
      %s24 = int_to_ptr.vmem [resolvable:$true] %s23
      %26 = dma.hbm_to_vmem [thread:$0]  %s22, 128, %s24, [#allocation3]
    $region5: #{tpu_custom_call.1} parent=1 // pred_fallthru
      _
    // Predicated region
    $region6: #{tpu_custom_call.1} parent=1 // pred_check
      _
    $region7: #{tpu_custom_call.1} parent=1 // pred_check_branch
      %28 = sbr.rel (0) target = $region9
    $region8: #{tpu_custom_call.1} parent=1 // pred_region
      %30 = vsyncadd [#allocation6], 0
      %s31 = sshll.u32 %s1, 4
      %s32 = int_to_ptr.hbm [resolvable:$true] %s31
      %s33 = sshll.u32 [#allocation5], 4
      %s34 = int_to_ptr.vmem [resolvable:$true] %s33
      %39 = dma.hbm_to_vmem [thread:$0]  %s32, 1024, %s34, [#allocation6], 128, 128, 8
    $region9: #{tpu_custom_call.1} parent=1 // pred_fallthru
      _
    // Predicated region
    $region10: #{tpu_custom_call.1} parent=1 // pred_check
      _
    $region11: #{tpu_custom_call.1} parent=1 // pred_check_branch
      %41 = sbr.rel (0) target = $region13
    $region12: #{tpu_custom_call.1} parent=1 // pred_region
      _
    $region13: #{tpu_custom_call.1} parent=1 // pred_fallthru
      _
    // Predicated region
    $region14: #{tpu_custom_call.1} parent=1 // pred_check
      _
    $region15: #{tpu_custom_call.1} parent=1 // pred_check_branch
      %43 = sbr.rel (0) target = $region17
    $region16: #{tpu_custom_call.1} parent=1 // pred_region
      %45 = vsyncadd [#allocation6], 0
      %s46 = sshll.u32 %s3, 4
      %s47 = int_to_ptr.hbm [resolvable:$true] %s46
      %s48 = sshll.u32 [#allocation7], 4
      %s49 = int_to_ptr.vmem [resolvable:$true] %s48
      %54 = dma.hbm_to_vmem [thread:$0]  %s47, 1024, %s49, [#allocation6], 128, 128, 8
    $region17: #{tpu_custom_call.1} parent=1 // pred_fallthru
      _
    // Predicated region
    $region18: #{tpu_custom_call.1} parent=1 // pred_check
      _
    $region19: #{tpu_custom_call.1} parent=1 // pred_check_branch
      %56 = sbr.rel (0) target = $region21
    $region20: #{tpu_custom_call.1} parent=1 // pred_region
      %58 = vsyncadd [#allocation9], 0
      %s60 = sshll.u32 %s4, 4
      %s61 = int_to_ptr.hbm [resolvable:$true] %s60
      %s62 = sshll.u32 [#allocation8], 4
      %s63 = int_to_ptr.vmem [resolvable:$true] %s62
      %65 = dma.hbm_to_vmem [thread:$0]  %s61, 16, %s63, [#allocation9]
    $region21: #{tpu_custom_call.1} parent=1 // pred_fallthru
      _
    // Predicated region
    $region22: #{tpu_custom_call.1} parent=1 // pred_check
      _
    $region23: #{tpu_custom_call.1} parent=1 // pred_check_branch
      %67 = sbr.rel (0) target = $region25
    $region24: #{tpu_custom_call.1} parent=1 // pred_region
      %69 = vsyncadd [#allocation9], 0
      %s70 = sshll.u32 %s5, 4
      %s71 = int_to_ptr.hbm [resolvable:$true] %s70
      %s72 = sshll.u32 [#allocation10], 4
      %s73 = int_to_ptr.vmem [resolvable:$true] %s72
      %78 = dma.hbm_to_vmem [thread:$0]  %s71, 4096, %s73, [#allocation9], 256, 256, 16
    $region25: #{tpu_custom_call.1} parent=1 // pred_fallthru
      _
    // Predicated region
    $region26: #{tpu_custom_call.1} parent=1 // pred_check
      _
    $region27: #{tpu_custom_call.1} parent=1 // pred_check_branch
      %80 = sbr.rel (0) target = $region29
    $region28: #{tpu_custom_call.1} parent=1 // pred_region
      _
    $region29: #{tpu_custom_call.1} parent=1 // pred_fallthru
      _
    // Predicated region
    $region30: #{tpu_custom_call.1} parent=1 // pred_check
      _
    $region31: #{tpu_custom_call.1} parent=1 // pred_check_branch
      %82 = sbr.rel (0) target = $region33
    $region32: #{tpu_custom_call.1} parent=1 // pred_region
      %84 = dma.done [#allocation3], 128
    $region33: #{tpu_custom_call.1} parent=1 // pred_fallthru
      _
    // Predicated region
    $region34: #{tpu_custom_call.1} parent=1 // pred_check
      _
    $region35: #{tpu_custom_call.1} parent=1 // pred_check_branch
      %86 = sbr.rel (0) target = $region37
    $region36: #{tpu_custom_call.1} parent=1 // pred_region
      %88 = dma.done [#allocation6], 1024
    $region37: #{tpu_custom_call.1} parent=1 // pred_fallthru
      _
    // Predicated region
    $region38: #{tpu_custom_call.1} parent=1 // pred_check
      _
    $region39: #{tpu_custom_call.1} parent=1 // pred_check_branch
      %90 = sbr.rel (0) target = $region41
    $region40: #{tpu_custom_call.1} parent=1 // pred_region
      %92 = dma.done [#allocation6], 1024
    $region41: #{tpu_custom_call.1} parent=1 // pred_fallthru
      _
    // Predicated region
    $region42: #{tpu_custom_call.1} parent=1 // pred_check
      _
    $region43: #{tpu_custom_call.1} parent=1 // pred_check_branch
      %94 = sbr.rel (0) target = $region45
    $region44: #{tpu_custom_call.1} parent=1 // pred_region
      %96 = dma.done [#allocation9], 16
    $region45: #{tpu_custom_call.1} parent=1 // pred_fallthru
      _
    // Predicated region
    $region46: #{tpu_custom_call.1} parent=1 // pred_check
      _
    $region47: #{tpu_custom_call.1} parent=1 // pred_check_branch
      %98 = sbr.rel (0) target = $region49
    $region48: #{tpu_custom_call.1} parent=1 // pred_region
      %100 = dma.done [#allocation9], 4096
    $region49: #{tpu_custom_call.1} parent=1 // pred_fallthru
      _
    %v101 = vld [vmem:[#allocation2] sm:$0xff]
    %v102 = vld [vmem:[#allocation5] sm:$0xff]
    %v103 = vld [vmem:[#allocation5 + $0x8] sm:$0xff]
    %v104 = vld [vmem:[#allocation5 + $0x10] sm:$0xff]
    %v105 = vld [vmem:[#allocation5 + $0x18] sm:$0xff]
    %v106 = vld [vmem:[#allocation5 + $0x20] sm:$0xff]
    %v107 = vld [vmem:[#allocation5 + $0x28] sm:$0xff]
    %v108 = vld [vmem:[#allocation5 + $0x30] sm:$0xff]
    %v109 = vld [vmem:[#allocation5 + $0x38] sm:$0xff]
    %v110 = vld [vmem:[%s2] sm:$0x1]
    %v112 = vperm.slane %v110, 0
    %vm114 = vcmask 523264
    %v116 = vsel %vm114, %v101, 0
    %118 = vmatpush.msra.mxu0 0.0
    %119 = vmatpush.msra.mxu0 0.0
    %120 = vmatpush.msra.mxu0 0.0
    %121 = vmatpush.msra.mxu0 0.0
    %122 = vmatpush.msra.mxu0 0.0
    %123 = vmatpush.msra.mxu0 0.0
    %124 = vmatpush.msra.mxu0 0.0
    %125 = vmatpush.msra.mxu0 0.0
    %126 = vmatpush.msra.mxu0 %v109
    %127 = vmatpush.msra.mxu0 %v108
    %128 = vmatpush.msra.mxu0 %v107
    %129 = vmatpush.msra.mxu0 %v106
    %130 = vmatpush.msra.mxu0 %v105
    %131 = vmatpush.msra.mxu0 %v104
    %132 = vmatpush.msra.mxu0 %v103
    %133 = vmatpush.msra.mxu0 %v102
    %134 = vmatmul.f32.gmra.mxu0 %v116
    %v135 = vpop.f32.mrf.mxu0
    %v136 = vadd.f32 %v112, %v135
    %137 = vdwg.mxu0
    %v138 = vmax.f32 %v136, 0.0
    %v139 = vld [vmem:[#allocation7] sm:$0xff]
    %v140 = vld [vmem:[#allocation7 + $0x8] sm:$0xff]
    %v141 = vld [vmem:[#allocation7 + $0x10] sm:$0xff]
    %v142 = vld [vmem:[#allocation7 + $0x18] sm:$0xff]
    %v143 = vld [vmem:[#allocation7 + $0x20] sm:$0xff]
    %v144 = vld [vmem:[#allocation7 + $0x28] sm:$0xff]
    %v145 = vld [vmem:[#allocation7 + $0x30] sm:$0xff]
    %v146 = vld [vmem:[#allocation7 + $0x38] sm:$0xff]
    %v147 = vld [vmem:[#allocation8] sm:$0x1]
    %v149 = vperm.slane %v147, 0
    %v152 = vsel %vm114, %v138, 0
    %154 = vmatpush.msra.mxu0 0.0
    %155 = vmatpush.msra.mxu0 0.0
    %156 = vmatpush.msra.mxu0 0.0
    %157 = vmatpush.msra.mxu0 0.0
    %158 = vmatpush.msra.mxu0 0.0
    %159 = vmatpush.msra.mxu0 0.0
    %160 = vmatpush.msra.mxu0 0.0
    %161 = vmatpush.msra.mxu0 0.0
    %162 = vmatpush.msra.mxu0 %v146
    %163 = vmatpush.msra.mxu0 %v145
    %164 = vmatpush.msra.mxu0 %v144
    %165 = vmatpush.msra.mxu0 %v143
    %166 = vmatpush.msra.mxu0 %v142
    %167 = vmatpush.msra.mxu0 %v141
    %168 = vmatpush.msra.mxu0 %v140
    %169 = vmatpush.msra.mxu0 %v139
    %170 = vmatmul.f32.gmra.mxu0 %v152
    %v171 = vpop.f32.mrf.mxu0
    %v172 = vadd.f32 %v149, %v171
    %173 = vdwg.mxu0
    %v174 = vmax.f32 %v172, 0.0
    %v175 = vld [vmem:[#allocation10] sm:$0xff]
    %v176 = vld [vmem:[#allocation10 + $0x8] sm:$0xff]
    %v177 = vld [vmem:[#allocation10 + $0x10] sm:$0xff]
    %v178 = vld [vmem:[#allocation10 + $0x18] sm:$0xff]
    %v179 = vld [vmem:[#allocation10 + $0x20] sm:$0xff]
    %v180 = vld [vmem:[#allocation10 + $0x28] sm:$0xff]
    %v181 = vld [vmem:[#allocation10 + $0x30] sm:$0xff]
    %v182 = vld [vmem:[#allocation10 + $0x38] sm:$0xff]
    %v183 = vld [vmem:[#allocation10 + $0x40] sm:$0xff]
    %v184 = vld [vmem:[#allocation10 + $0x48] sm:$0xff]
    %v185 = vld [vmem:[#allocation10 + $0x50] sm:$0xff]
    %v186 = vld [vmem:[#allocation10 + $0x58] sm:$0xff]
    %v187 = vld [vmem:[#allocation10 + $0x60] sm:$0xff]
    %v188 = vld [vmem:[#allocation10 + $0x68] sm:$0xff]
    %v189 = vld [vmem:[#allocation10 + $0x70] sm:$0xff]
    %v190 = vld [vmem:[#allocation10 + $0x78] sm:$0xff]
    %v191 = vld [vmem:[#allocation10 + $0x80] sm:$0xff]
    %v192 = vld [vmem:[#allocation10 + $0x88] sm:$0xff]
    %v193 = vld [vmem:[#allocation10 + $0x90] sm:$0xff]
    %v194 = vld [vmem:[#allocation10 + $0x98] sm:$0xff]
    %v195 = vld [vmem:[#allocation10 + $0xa0] sm:$0xff]
    %v196 = vld [vmem:[#allocation10 + $0xa8] sm:$0xff]
    %v197 = vld [vmem:[#allocation10 + $0xb0] sm:$0xff]
    %v198 = vld [vmem:[#allocation10 + $0xb8] sm:$0xff]
    %v199 = vld [vmem:[#allocation10 + $0xc0] sm:$0xff]
    %v200 = vld [vmem:[#allocation10 + $0xc8] sm:$0xff]
    %v201 = vld [vmem:[#allocation10 + $0xd0] sm:$0xff]
    %v202 = vld [vmem:[#allocation10 + $0xd8] sm:$0xff]
    %v203 = vld [vmem:[#allocation10 + $0xe0] sm:$0xff]
    %v204 = vld [vmem:[#allocation10 + $0xe8] sm:$0xff]
    %v205 = vld [vmem:[#allocation10 + $0xf0] sm:$0xff]
    %v206 = vld [vmem:[#allocation10 + $0xf8] sm:$0xff]
    %v207 = vld [vmem:[%s6] sm:$0x3]
    %v209 = vperm.slane %v207, 0
    %v210 = vperm.slane %v207, 1
    %213 = vmatpush.msra.mxu0 %v205
    %214 = vmatpush.msra.mxu0 %v203
    %215 = vmatpush.msra.mxu0 %v201
    %216 = vmatpush.msra.mxu0 %v199
    %217 = vmatpush.msra.mxu0 %v197
    %218 = vmatpush.msra.mxu0 %v195
    %219 = vmatpush.msra.mxu0 %v193
    %220 = vmatpush.msra.mxu0 %v191
    %221 = vmatpush.msra.mxu0 %v189
    %222 = vmatpush.msra.mxu0 %v187
    %223 = vmatpush.msra.mxu0 %v185
    %224 = vmatpush.msra.mxu0 %v183
    %225 = vmatpush.msra.mxu0 %v181
    %226 = vmatpush.msra.mxu0 %v179
    %227 = vmatpush.msra.mxu0 %v177
    %228 = vmatpush.msra.mxu0 %v175
    %229 = vmatmul.f32.gmra.mxu0 %v174
    %v230 = vpop.f32.mrf.mxu0
    %v231 = vadd.f32 %v209, %v230
    %232 = vdwg.mxu0
    %233 = vmatpush.msra.mxu0 %v206
    %234 = vmatpush.msra.mxu0 %v204
    %235 = vmatpush.msra.mxu0 %v202
    %236 = vmatpush.msra.mxu0 %v200
    %237 = vmatpush.msra.mxu0 %v198
    %238 = vmatpush.msra.mxu0 %v196
    %239 = vmatpush.msra.mxu0 %v194
    %240 = vmatpush.msra.mxu0 %v192
    %241 = vmatpush.msra.mxu0 %v190
    %242 = vmatpush.msra.mxu0 %v188
    %243 = vmatpush.msra.mxu0 %v186
    %244 = vmatpush.msra.mxu0 %v184
    %245 = vmatpush.msra.mxu0 %v182
    %246 = vmatpush.msra.mxu0 %v180
    %247 = vmatpush.msra.mxu0 %v178
    %248 = vmatpush.msra.mxu0 %v176
    %249 = vmatmul.f32.gmra.mxu0 %v174
    %v250 = vpop.f32.mrf.mxu0
    %v251 = vadd.f32 %v210, %v250
    %252 = vdwg.mxu0
    %253 = vst [vmem:[#allocation11] sm:$0xff] %v231
    %254 = vst [vmem:[#allocation11 + $0x8] sm:$0xff] %v251
    // Predicated region
    $region50: #{tpu_custom_call.1} parent=1 // pred_check
      _
    $region51: #{tpu_custom_call.1} parent=1 // pred_check_branch
      %256 = sbr.rel (0) target = $region53
    $region52: #{tpu_custom_call.1} parent=1 // pred_region
      %258 = vsyncadd [#allocation4], 0
      %s260 = sshll.u32 [#allocation11], 4
      %s261 = int_to_ptr.vmem [resolvable:$true] %s260
      %s262 = sshll.u32 %s7, 4
      %s263 = int_to_ptr.hbm [resolvable:$true] %s262
      %265 = dma.vmem_to_hbm [thread:$0]  %s261, 256, %s263, [#allocation4]
    $region53: #{tpu_custom_call.1} parent=1 // pred_fallthru
      _
    // Predicated region
    $region54: #{tpu_custom_call.1} parent=1 // pred_check
      _
    $region55: #{tpu_custom_call.1} parent=1 // pred_check_branch
      %267 = sbr.rel (0) target = $region57
    $region56: #{tpu_custom_call.1} parent=1 // pred_region
      %269 = dma.done [#allocation4], 256
    $region57: #{tpu_custom_call.1} parent=1 // pred_fallthru
      _
    %270 = vsyncpa [#allocation3], 1
    %271 = vsyncpa [#allocation6], 1
    %272 = vsyncpa [#allocation9], 1
    %273 = vsyncpa [#allocation4], 1

</llo_original>
